<compile_context>
chip_gen: v6e
topology: v6e:2x2x1
jax: 0.10.0
libtpu: 0.0.40
codegen_flags: <defaults>
</compile_context>

<pallas_src>
import functools
import math

import jax
import jax.numpy as jnp
from jax import lax
from jax.experimental import pallas as pl
from jax.experimental.pallas import tpu as pltpu


def _vmem_capacity_bytes() -> int:
    """Generation-aware VMEM capacity; conservative 64 MiB fallback (v7x/TC)."""
    try:
        info = pltpu.get_tpu_info()
        for name in ("vmem_capacity_bytes", "vmem_size_bytes", "vmem_bytes"):
            cap = getattr(info, name, None)
            if cap:
                return int(cap)
    except Exception:
        pass
    return 64 * 1024 * 1024


def _kmax_kernel(x_ref, o_ref, *, k: int):
    # x_ref: (TR, L) block in VMEM; o_ref: (TR, k)
    x = x_ref[...]
    tr, L = x.shape

    if jnp.issubdtype(x_ref.dtype, jnp.floating):
        cdtype = jnp.float32
        sentinel = jnp.array(-jnp.inf, dtype=cdtype)
    else:
        # Compare/emit integers exactly in int32 (no f32 rounding).
        cdtype = jnp.int32
        sentinel = jnp.array(jnp.iinfo(jnp.int32).min, dtype=cdtype)

    xf = x.astype(cdtype)
    col = lax.broadcasted_iota(jnp.int32, (tr, L), 1)    # lane index, wide
    slot = lax.broadcasted_iota(jnp.int32, (tr, k), 1)   # output slot, narrow

    # --- Fused selection: k picks, 2 wide reductions + ~4 wide elementwise
    #     ops each; picked (value, index) land in (TR, k) accumulators. ---
    def pick(p, carry):
        xf, vals, idxs = carry
        row_max = jnp.max(xf, axis=-1, keepdims=True)                    # (TR,1)
        arg = jnp.min(jnp.where(xf == row_max, col, L),
                      axis=-1, keepdims=True)                            # (TR,1)
        xf = jnp.where(col == arg, sentinel, xf)                         # knock out
        write = slot == p                                                # (TR,k)
        vals = jnp.where(write, row_max, vals)
        idxs = jnp.where(write, arg, idxs)
        return xf, vals, idxs

    init = (xf,
            jnp.zeros((tr, k), cdtype),
            jnp.zeros((tr, k), jnp.int32))
    _, vals, idxs = lax.fori_loop(0, k, pick, init, unroll=True)

    # --- Restore ORIGINAL index order: rank each pick by its source index
    #     (tie-break on pick order), then permute within the (TR, k) tile. ---
    ranks = jnp.zeros((tr, k), jnp.int32)
    for q in range(k):
        iq = idxs[:, q:q + 1]
        ranks = ranks + ((iq < idxs) | ((iq == idxs) & (q < slot))).astype(
            jnp.int32)
    out = jnp.zeros((tr, k), cdtype)
    for p in range(k):
        out = jnp.where(slot == ranks[:, p:p + 1], vals[:, p:p + 1], out)

    o_ref[...] = out.astype(o_ref.dtype)


def k_max_pooling(x, k: int, dim: int):
    """Equivalent of K_MaxPooling(k)(x, dim) from the PyTorch module."""
    dim = dim % x.ndim
    L = x.shape[dim]
    if k > L:
        raise ValueError(f"k={k} exceeds size {L} of pooling dim {dim}")

    # Move the pooled axis last and flatten leading axes -> (R, L) rows.
    # (A no-op copy when `dim` is already the last axis, the common TextCNN case.)
    # TODO(synk): for non-last `dim` on huge tensors, a multi-D grid that keeps
    # the pooled axis as the lane axis would avoid this HBM transpose.
    x_last = jnp.moveaxis(x, dim, -1)
    lead = x_last.shape[:-1]
    R = math.prod(lead) if lead else 1
    x2 = x_last.reshape(R, L)

    # Row tile: multiple of 8 sublanes, sized against a generation-aware VMEM
    # working-set budget (double-buffered input + a few (TR, L) compute temps).
    cap = _vmem_capacity_bytes()
    budget = cap // 4
    itemsize = jnp.dtype(x.dtype).itemsize
    bytes_per_row = L * (2 * itemsize + 6 * 4) + 64
    tr = (budget // max(bytes_per_row, 1)) // 8 * 8
    tr = max(8, min(1024, tr))
    tr = min(tr, pl.cdiv(R, 8) * 8)       # never exceed the (aligned) row count

    kernel = functools.partial(_kmax_kernel, k=k)
    out2 = pl.pallas_call(
        kernel,
        out_shape=jax.ShapeDtypeStruct((R, k), x.dtype),
        grid=(pl.cdiv(R, tr),),           # no wrapper pad; last block is partial
        in_specs=[pl.BlockSpec((tr, L), lambda i: (i, 0))],
        out_specs=pl.BlockSpec((tr, k), lambda i: (i, 0)),
        compiler_params=pltpu.CompilerParams(
            dimension_semantics=("parallel",),
            vmem_limit_bytes=min(int(0.6 * cap), 96 * 1024 * 1024),
        ),
    )(x2)

    out = out2.reshape(*lead, k)
    return jnp.moveaxis(out, -1, dim)


def _reference(x, k: int, dim: int):
    # Pure-JAX reference matching the PyTorch semantics.
    dim = dim % x.ndim
    x_last = jnp.moveaxis(x, dim, -1)
    _, idx = lax.top_k(x_last, k)          # indices of k largest along last axis
    idx = jnp.sort(idx, axis=-1)           # restore original order
    out = jnp.take_along_axis(x_last, idx, axis=-1)
    return jnp.moveaxis(out, -1, dim)


if __name__ == "__main__":
    # TextCNN post-conv layout: (batch, channels, sequence), pool over sequence.
    key = jax.random.PRNGKey(0)
    B, C, L = 2, 4, 16
    k, dim = 3, 2
    x = jax.random.normal(key, (B, C, L), dtype=jnp.float32)

    out = jax.block_until_ready(k_max_pooling(x, k, dim))
    ref = _reference(x, k, dim)
    assert out.shape == (B, C, k), out.shape
    assert jnp.allclose(out, ref, atol=1e-6), "mismatch vs reference"

    # Second case: partial last row-block (R not a tile multiple) + heavy ties.
    x2 = jax.random.randint(jax.random.PRNGKey(1), (3, 5, 40), 0, 7).astype(jnp.float32)
    out2 = jax.block_until_ready(k_max_pooling(x2, 4, 2))
    ref2 = _reference(x2, 4, 2)
    assert out2.shape == (3, 5, 4), out2.shape
    assert jnp.allclose(out2, ref2, atol=1e-6), "mismatch vs reference (ties/partial block)"

    # Third case: pooled axis not last (exercises the wrapper moveaxis path).
    x3 = jax.random.normal(jax.random.PRNGKey(2), (2, 16, 4), dtype=jnp.float32)
    out3 = jax.block_until_ready(k_max_pooling(x3, 3, 1))
    ref3 = _reference(x3, 3, 1)
    assert out3.shape == (2, 3, 4), out3.shape
    assert jnp.allclose(out3, ref3, atol=1e-6), "mismatch vs reference (dim=1)"

    print("KERNEL_OK")
</pallas_src>

<mosaic_0001>
module attributes {stable_mosaic.version = 11 : i64} {
  func.func @_kmax_kernel(%arg0: i32, %arg1: memref<8x16xf32, #tpu.memory_space<vmem>>, %arg2: memref<8x3xf32, #tpu.memory_space<vmem>>) attributes {dimension_semantics = [#tpu.dimension_semantics<parallel>], iteration_bounds = array<i64: 1>, scalar_prefetch = 0 : i64, scratch_operands = 0 : i64, tpu.core_type = #tpu.core_type<tc>, window_params = [{transform_indices = @transform_0, window_bounds = array<i64: 8, 16>}, {transform_indices = @transform_1, window_bounds = array<i64: 8, 3>}]} {
    %c0 = arith.constant 0 : index
    %c0_0 = arith.constant 0 : index
    %0 = vector.load %arg1[%c0, %c0_0] : memref<8x16xf32, #tpu.memory_space<vmem>>, vector<8x16xf32>
    %1 = tpu.iota {dimensions = array<i32: 1>} : vector<8x16xi32>
    %2 = tpu.iota {dimensions = array<i32: 1>} : vector<8x3xi32>
    %cst = arith.constant 0.000000e+00 : f32
    %3 = vector.broadcast %cst : f32 to vector<8x3xf32>
    %c0_i32 = arith.constant 0 : i32
    %4 = vector.broadcast %c0_i32 : i32 to vector<8x3xi32>
    %cst_1 = arith.constant 0xFF800000 : f32
    %c0_i32_2 = arith.constant 0 : i32
    %cst_3 = arith.constant dense<0xFF800000> : vector<8xf32>
    %5 = vector.multi_reduction <maximumf>, %0, %cst_3 [1] : vector<8x16xf32> to vector<8xf32>
    %6 = vector.shape_cast %5 : vector<8xf32> to vector<8x1xf32>
    %7 = vector.broadcast %6 : vector<8x1xf32> to vector<8x16xf32>
    %8 = arith.cmpf oeq, %0, %7 : vector<8x16xf32>
    %c16_i32 = arith.constant 16 : i32
    %9 = vector.broadcast %c16_i32 : i32 to vector<8x16xi32>
    %10 = arith.select %8, %1, %9 : vector<8x16xi1>, vector<8x16xi32>
    %cst_4 = arith.constant dense<2147483647> : vector<8xi32>
    %11 = vector.multi_reduction <minsi>, %10, %cst_4 [1] : vector<8x16xi32> to vector<8xi32>
    %12 = vector.shape_cast %11 : vector<8xi32> to vector<8x1xi32>
    %13 = vector.broadcast %12 : vector<8x1xi32> to vector<8x16xi32>
    %14 = arith.cmpi eq, %1, %13 : vector<8x16xi32>
    %15 = vector.broadcast %cst_1 : f32 to vector<8x16xf32>
    %16 = arith.select %14, %15, %0 : vector<8x16xi1>, vector<8x16xf32>
    %17 = vector.broadcast %c0_i32_2 : i32 to vector<8x3xi32>
    %18 = arith.cmpi eq, %2, %17 : vector<8x3xi32>
    %19 = vector.shape_cast %6 : vector<8x1xf32> to vector<8x1xf32>
    %20 = vector.broadcast %19 : vector<8x1xf32> to vector<8x3xf32>
    %21 = arith.select %18, %20, %3 : vector<8x3xi1>, vector<8x3xf32>
    %22 = vector.shape_cast %12 : vector<8x1xi32> to vector<8x1xi32>
    %23 = vector.broadcast %22 : vector<8x1xi32> to vector<8x3xi32>
    %24 = arith.select %18, %23, %4 : vector<8x3xi1>, vector<8x3xi32>
    %c1_i32 = arith.constant 1 : i32
    %cst_5 = arith.constant dense<0xFF800000> : vector<8xf32>
    %25 = vector.multi_reduction <maximumf>, %16, %cst_5 [1] : vector<8x16xf32> to vector<8xf32>
    %26 = vector.shape_cast %25 : vector<8xf32> to vector<8x1xf32>
    %27 = vector.broadcast %26 : vector<8x1xf32> to vector<8x16xf32>
    %28 = arith.cmpf oeq, %16, %27 : vector<8x16xf32>
    %c16_i32_6 = arith.constant 16 : i32
    %29 = vector.broadcast %c16_i32_6 : i32 to vector<8x16xi32>
    %30 = arith.select %28, %1, %29 : vector<8x16xi1>, vector<8x16xi32>
    %cst_7 = arith.constant dense<2147483647> : vector<8xi32>
    %31 = vector.multi_reduction <minsi>, %30, %cst_7 [1] : vector<8x16xi32> to vector<8xi32>
    %32 = vector.shape_cast %31 : vector<8xi32> to vector<8x1xi32>
    %33 = vector.broadcast %32 : vector<8x1xi32> to vector<8x16xi32>
    %34 = arith.cmpi eq, %1, %33 : vector<8x16xi32>
    %35 = vector.broadcast %cst_1 : f32 to vector<8x16xf32>
    %36 = arith.select %34, %35, %16 : vector<8x16xi1>, vector<8x16xf32>
    %37 = vector.broadcast %c1_i32 : i32 to vector<8x3xi32>
    %38 = arith.cmpi eq, %2, %37 : vector<8x3xi32>
    %39 = vector.shape_cast %26 : vector<8x1xf32> to vector<8x1xf32>
    %40 = vector.broadcast %39 : vector<8x1xf32> to vector<8x3xf32>
    %41 = arith.select %38, %40, %21 : vector<8x3xi1>, vector<8x3xf32>
    %42 = vector.shape_cast %32 : vector<8x1xi32> to vector<8x1xi32>
    %43 = vector.broadcast %42 : vector<8x1xi32> to vector<8x3xi32>
    %44 = arith.select %38, %43, %24 : vector<8x3xi1>, vector<8x3xi32>
    %c2_i32 = arith.constant 2 : i32
    %cst_8 = arith.constant dense<0xFF800000> : vector<8xf32>
    %45 = vector.multi_reduction <maximumf>, %36, %cst_8 [1] : vector<8x16xf32> to vector<8xf32>
    %46 = vector.shape_cast %45 : vector<8xf32> to vector<8x1xf32>
    %47 = vector.broadcast %46 : vector<8x1xf32> to vector<8x16xf32>
    %48 = arith.cmpf oeq, %36, %47 : vector<8x16xf32>
    %c16_i32_9 = arith.constant 16 : i32
    %49 = vector.broadcast %c16_i32_9 : i32 to vector<8x16xi32>
    %50 = arith.select %48, %1, %49 : vector<8x16xi1>, vector<8x16xi32>
    %cst_10 = arith.constant dense<2147483647> : vector<8xi32>
    %51 = vector.multi_reduction <minsi>, %50, %cst_10 [1] : vector<8x16xi32> to vector<8xi32>
    %52 = vector.shape_cast %51 : vector<8xi32> to vector<8x1xi32>
    %53 = vector.broadcast %52 : vector<8x1xi32> to vector<8x16xi32>
    %54 = arith.cmpi eq, %1, %53 : vector<8x16xi32>
    %55 = vector.broadcast %cst_1 : f32 to vector<8x16xf32>
    %56 = arith.select %54, %55, %36 : vector<8x16xi1>, vector<8x16xf32>
    %57 = vector.broadcast %c2_i32 : i32 to vector<8x3xi32>
    %58 = arith.cmpi eq, %2, %57 : vector<8x3xi32>
    %59 = vector.shape_cast %46 : vector<8x1xf32> to vector<8x1xf32>
    %60 = vector.broadcast %59 : vector<8x1xf32> to vector<8x3xf32>
    %61 = arith.select %58, %60, %41 : vector<8x3xi1>, vector<8x3xf32>
    %62 = vector.shape_cast %52 : vector<8x1xi32> to vector<8x1xi32>
    %63 = vector.broadcast %62 : vector<8x1xi32> to vector<8x3xi32>
    %64 = arith.select %58, %63, %44 : vector<8x3xi1>, vector<8x3xi32>
    %c3_i32 = arith.constant 3 : i32
    %c0_i32_11 = arith.constant 0 : i32
    %65 = vector.broadcast %c0_i32_11 : i32 to vector<8x3xi32>
    %66 = vector.extract_strided_slice %64 {offsets = [0, 0], sizes = [8, 1], strides = [1, 1]} : vector<8x3xi32> to vector<8x1xi32>
    %67 = vector.broadcast %66 : vector<8x1xi32> to vector<8x3xi32>
    %68 = arith.cmpi slt, %67, %64 : vector<8x3xi32>
    %69 = vector.broadcast %66 : vector<8x1xi32> to vector<8x3xi32>
    %70 = arith.cmpi eq, %69, %64 : vector<8x3xi32>
    %c0_i32_12 = arith.constant 0 : i32
    %71 = vector.broadcast %c0_i32_12 : i32 to vector<8x3xi32>
    %72 = arith.cmpi sgt, %2, %71 : vector<8x3xi32>
    %73 = arith.andi %70, %72 : vector<8x3xi1>
    %74 = arith.ori %68, %73 : vector<8x3xi1>
    %75 = arith.extui %74 : vector<8x3xi1> to vector<8x3xi32>
    %76 = arith.addi %65, %75 : vector<8x3xi32>
    %77 = vector.extract_strided_slice %64 {offsets = [0, 1], sizes = [8, 1], strides = [1, 1]} : vector<8x3xi32> to vector<8x1xi32>
    %78 = vector.broadcast %77 : vector<8x1xi32> to vector<8x3xi32>
    %79 = arith.cmpi slt, %78, %64 : vector<8x3xi32>
    %80 = vector.broadcast %77 : vector<8x1xi32> to vector<8x3xi32>
    %81 = arith.cmpi eq, %80, %64 : vector<8x3xi32>
    %c1_i32_13 = arith.constant 1 : i32
    %82 = vector.broadcast %c1_i32_13 : i32 to vector<8x3xi32>
    %83 = arith.cmpi sgt, %2, %82 : vector<8x3xi32>
    %84 = arith.andi %81, %83 : vector<8x3xi1>
    %85 = arith.ori %79, %84 : vector<8x3xi1>
    %86 = arith.extui %85 : vector<8x3xi1> to vector<8x3xi32>
    %87 = arith.addi %76, %86 : vector<8x3xi32>
    %88 = vector.extract_strided_slice %64 {offsets = [0, 2], sizes = [8, 1], strides = [1, 1]} : vector<8x3xi32> to vector<8x1xi32>
    %89 = vector.broadcast %88 : vector<8x1xi32> to vector<8x3xi32>
    %90 = arith.cmpi slt, %89, %64 : vector<8x3xi32>
    %91 = vector.broadcast %88 : vector<8x1xi32> to vector<8x3xi32>
    %92 = arith.cmpi eq, %91, %64 : vector<8x3xi32>
    %c2_i32_14 = arith.constant 2 : i32
    %93 = vector.broadcast %c2_i32_14 : i32 to vector<8x3xi32>
    %94 = arith.cmpi sgt, %2, %93 : vector<8x3xi32>
    %95 = arith.andi %92, %94 : vector<8x3xi1>
    %96 = arith.ori %90, %95 : vector<8x3xi1>
    %97 = arith.extui %96 : vector<8x3xi1> to vector<8x3xi32>
    %98 = arith.addi %87, %97 : vector<8x3xi32>
    %cst_15 = arith.constant 0.000000e+00 : f32
    %99 = vector.broadcast %cst_15 : f32 to vector<8x3xf32>
    %100 = vector.extract_strided_slice %98 {offsets = [0, 0], sizes = [8, 1], strides = [1, 1]} : vector<8x3xi32> to vector<8x1xi32>
    %101 = vector.broadcast %100 : vector<8x1xi32> to vector<8x3xi32>
    %102 = arith.cmpi eq, %2, %101 : vector<8x3xi32>
    %103 = vector.extract_strided_slice %61 {offsets = [0, 0], sizes = [8, 1], strides = [1, 1]} : vector<8x3xf32> to vector<8x1xf32>
    %104 = vector.shape_cast %103 : vector<8x1xf32> to vector<8x1xf32>
    %105 = vector.broadcast %104 : vector<8x1xf32> to vector<8x3xf32>
    %106 = arith.select %102, %105, %99 : vector<8x3xi1>, vector<8x3xf32>
    %107 = vector.extract_strided_slice %98 {offsets = [0, 1], sizes = [8, 1], strides = [1, 1]} : vector<8x3xi32> to vector<8x1xi32>
    %108 = vector.broadcast %107 : vector<8x1xi32> to vector<8x3xi32>
    %109 = arith.cmpi eq, %2, %108 : vector<8x3xi32>
    %110 = vector.extract_strided_slice %61 {offsets = [0, 1], sizes = [8, 1], strides = [1, 1]} : vector<8x3xf32> to vector<8x1xf32>
    %111 = vector.shape_cast %110 : vector<8x1xf32> to vector<8x1xf32>
    %112 = vector.broadcast %111 : vector<8x1xf32> to vector<8x3xf32>
    %113 = arith.select %109, %112, %106 : vector<8x3xi1>, vector<8x3xf32>
    %114 = vector.extract_strided_slice %98 {offsets = [0, 2], sizes = [8, 1], strides = [1, 1]} : vector<8x3xi32> to vector<8x1xi32>
    %115 = vector.broadcast %114 : vector<8x1xi32> to vector<8x3xi32>
    %116 = arith.cmpi eq, %2, %115 : vector<8x3xi32>
    %117 = vector.extract_strided_slice %61 {offsets = [0, 2], sizes = [8, 1], strides = [1, 1]} : vector<8x3xf32> to vector<8x1xf32>
    %118 = vector.shape_cast %117 : vector<8x1xf32> to vector<8x1xf32>
    %119 = vector.broadcast %118 : vector<8x1xf32> to vector<8x3xf32>
    %120 = arith.select %116, %119, %113 : vector<8x3xi1>, vector<8x3xf32>
    %c0_16 = arith.constant 0 : index
    %c0_17 = arith.constant 0 : index
    %121 = vector.load %arg2[%c0_16, %c0_17] : memref<8x3xf32, #tpu.memory_space<vmem>>, vector<8x3xf32>
    tpu.vector_store %arg2[%c0_16, %c0_17], %120 {strides = array<i32>} : memref<8x3xf32, #tpu.memory_space<vmem>>, vector<8x3xf32>,
    return
  }
  func.func @transform_0(%arg0: i32) -> (i32, i32) {
    %c0_i32 = arith.constant 0 : i32
    %c0_i32_0 = arith.constant 0 : i32
    return %arg0, %c0_i32 : i32, i32
  }
  func.func @transform_1(%arg0: i32) -> (i32, i32) {
    %c0_i32 = arith.constant 0 : i32
    %c0_i32_0 = arith.constant 0 : i32
    return %arg0, %c0_i32 : i32, i32
  }
}

</mosaic_0001>

<llo_original>
// kernel: tpu_custom_call.1
$region0: #{tpu_custom_call.1}
  #allocation0 [shape = 'u32[]', space=smem, size = 0x4, offset = 0x4, fixed_abs, tag = 'smem constant byte address 0x4 - core index']
  #allocation1 [shape = 'u32[144,128]{1,0:T(1,128)}', space=vmem, size = 0x12000, scoped, tag = 'internal scratch']
  %s0 = inlined_call_operand.hbm [shape: f32[8,16], index: 0, kind: input, shape index: {}]
  %s1 = inlined_call_operand.vmem [shape: f32[8,3], index: 1, kind: output, shape index: {}]
  %s2 = sld [smem:[#allocation0]]
  $region18: #{tpu_custom_call.1} parent=0
    _
  %s4 = ssub.s32 1, %s2
  %s5 = scalar_select 0, %s4, %s2
  $region1: #{tpu_custom_call.1} parent=0
    #allocation2 [shape = 'u8[4096]{0}', space=vmem, size = 0x1000, scoped, tag = 'input window, operand 0, single buffered']
    #allocation3 [shape = 's32[1]{0}', space=sflag, size = 0x4, scoped, tag = 'scoped memory for tpu_custom_call.1']
    %6 = vsyncpa [#allocation3], 0
    // Predicated region
    $region2: #{tpu_custom_call.1} parent=1 // pred_check
      _
    $region3: #{tpu_custom_call.1} parent=1 // pred_check_branch
      %8 = sbr.rel (0) target = $region5
    $region4: #{tpu_custom_call.1} parent=1 // pred_region
      %s10 = ssub.s32 128, 128
      %11 = vsyncadd [#allocation3], %s10
      %s13 = sshll.u32 [#allocation2], 4
      %s14 = int_to_ptr.vmem [resolvable:$true] %s13
      %16 = dma.hbm_to_vmem [thread:$0]  %s0, 128, %s14, [#allocation3]
    $region5: #{tpu_custom_call.1} parent=1 // pred_fallthru
      _
    // Predicated region
    $region6: #{tpu_custom_call.1} parent=1 // pred_check
      _
    $region7: #{tpu_custom_call.1} parent=1 // pred_check_branch
      %18 = sbr.rel (0) target = $region9
    $region8: #{tpu_custom_call.1} parent=1 // pred_region
      %19 = dma.done [#allocation3], 128
    $region9: #{tpu_custom_call.1} parent=1 // pred_fallthru
      _
    %v20 = vld [vmem:[#allocation2] sm:$0xff]
    %v21 = vlaneseq
    %v22 = vand.u32 %v21, 127
    %vm23 = vcmask 130048
    %v24 = vsel %vm23, %v20, -inf
    %25 = vmax.xlane.f32.xlu0 %v24
    %v26 = vpop.xlane.xlu0 %25
    %vm27 = vcmp.eq.f32.partialorder %v20, %v26
    %v28 = vsel %vm27, %v22, 16
    %v29 = vsel %vm23, %v28, 2147483647
    %v30 = vand.u32 %v29, 65535
    %v31 = vshra.s32 %v29, 16
    %v32 = vcvt.s32.f32 %v30
    %v33 = vcvt.s32.f32 %v31
    %34 = vmin.xlane.f32.xlu0 %v33
    %v35 = vpop.xlane.xlu0 %34
    %vm36 = vcmp.eq.f32.partialorder %v33, %v35
    %v37 = vsel %vm36, %v32, inf
    %38 = vmin.xlane.f32.xlu0 %v37
    %v39 = vpop.xlane.xlu0 %38
    %v40 = vcvt.f32.s32 %v39
    %v41 = vcvt.f32.s32 %v35
    %v42 = vshll.u32 %v41, 16
    %v43 = vadd.s32 %v42, %v40
    %vm44 = vcmp.eq.s32.totalorder %v22, %v43
    %v45 = vsel %vm44, -inf, %v20
    %vm46 = vcmp.eq.s32.totalorder %v22, 0
    %v47 = vsel %vm46, %v26, 0.0
    %v48 = vsel %vm46, %v43, 0
    %v49 = vsel %vm23, %v45, -inf
    %50 = vmax.xlane.f32.xlu0 %v49
    %v51 = vpop.xlane.xlu0 %50
    %vm52 = vcmp.eq.f32.partialorder %v45, %v51
    %v53 = vsel %vm52, %v22, 16
    %v54 = vsel %vm23, %v53, 2147483647
    %v55 = vand.u32 %v54, 65535
    %v56 = vshra.s32 %v54, 16
    %v57 = vcvt.s32.f32 %v55
    %v58 = vcvt.s32.f32 %v56
    %59 = vmin.xlane.f32.xlu0 %v58
    %v60 = vpop.xlane.xlu0 %59
    %vm61 = vcmp.eq.f32.partialorder %v58, %v60
    %v62 = vsel %vm61, %v57, inf
    %63 = vmin.xlane.f32.xlu0 %v62
    %v64 = vpop.xlane.xlu0 %63
    %v65 = vcvt.f32.s32 %v64
    %v66 = vcvt.f32.s32 %v60
    %v67 = vshll.u32 %v66, 16
    %v68 = vadd.s32 %v67, %v65
    %vm69 = vcmp.eq.s32.totalorder %v22, %v68
    %v70 = vsel %vm69, -inf, %v45
    %vm71 = vcmp.eq.s32.totalorder %v22, 1
    %v72 = vsel %vm71, %v51, %v47
    %v73 = vsel %vm71, %v68, %v48
    %v74 = vsel %vm23, %v70, -inf
    %75 = vmax.xlane.f32.xlu0 %v74
    %v76 = vpop.xlane.xlu0 %75
    %vm77 = vcmp.eq.f32.partialorder %v70, %v76
    %v78 = vsel %vm77, %v22, 16
    %v79 = vsel %vm23, %v78, 2147483647
    %v80 = vand.u32 %v79, 65535
    %v81 = vshra.s32 %v79, 16
    %v82 = vcvt.s32.f32 %v80
    %v83 = vcvt.s32.f32 %v81
    %84 = vmin.xlane.f32.xlu0 %v83
    %v85 = vpop.xlane.xlu0 %84
    %vm86 = vcmp.eq.f32.partialorder %v83, %v85
    %v87 = vsel %vm86, %v82, inf
    %88 = vmin.xlane.f32.xlu0 %v87
    %v89 = vpop.xlane.xlu0 %88
    %v90 = vcvt.f32.s32 %v89
    %v91 = vcvt.f32.s32 %v85
    %v92 = vshll.u32 %v91, 16
    %v93 = vadd.s32 %v92, %v90
    %vm94 = vcmp.eq.s32.totalorder %v22, 2
    %v95 = vsel %vm94, %v76, %v72
    %v96 = vsel %vm94, %v93, %v73
    %97 = vset.pattern.permute.xlu0 0
    %98 = vperm.xlu0 %97, %v96
    %v99 = vpop.permute.xlu0 %98
    %vm100 = vcmp.lt.s32.totalorder %v99, %v96
    %vm101 = vcmp.eq.s32.totalorder %v99, %v96
    %vm102 = vcmp.gt.s32.totalorder %v22, 0
    %vm103 = vmand %vm101, %vm102
    %vm104 = vmor %vm100, %vm103
    %v105 = vsel %vm104, 1, 0
    %106 = vset.pattern.permute.xlu0 1
    %107 = vperm.xlu0 %106, %v96
    %v108 = vpop.permute.xlu0 %107
    %vm109 = vcmp.lt.s32.totalorder %v108, %v96
    %vm110 = vcmp.eq.s32.totalorder %v108, %v96
    %vm111 = vcmp.gt.s32.totalorder %v22, 1
    %vm112 = vmand %vm110, %vm111
    %vm113 = vmor %vm109, %vm112
    %v114 = vsel %vm113, 1, 0
    %v115 = vadd.s32 %v105, %v114
    %116 = vset.pattern.permute.xlu0 2
    %117 = vperm.xlu0 %116, %v96
    %v118 = vpop.permute.xlu0 %117
    %vm119 = vcmp.lt.s32.totalorder %v118, %v96
    %vm120 = vcmp.eq.s32.totalorder %v118, %v96
    %vm121 = vcmp.gt.s32.totalorder %v22, 2
    %vm122 = vmand %vm120, %vm121
    %vm123 = vmor %vm119, %vm122
    %v124 = vsel %vm123, 1, 0
    %v125 = vadd.s32 %v115, %v124
    %126 = vset.pattern.permute.xlu0 0
    %127 = vperm.xlu0 %126, %v125
    %v128 = vpop.permute.xlu0 %127
    %vm129 = vcmp.eq.s32.totalorder %v22, %v128
    %131 = vset.pattern.permute.xlu0 0
    %132 = vperm.xlu0 %131, %v95
    %v133 = vpop.permute.xlu0 %132
    %v135 = vsel %vm129, %v133, 0.0
    %136 = vset.pattern.permute.xlu0 1
    %137 = vperm.xlu0 %136, %v125
    %v138 = vpop.permute.xlu0 %137
    %vm139 = vcmp.eq.s32.totalorder %v22, %v138
    %140 = vset.pattern.permute.xlu0 1
    %141 = vperm.xlu0 %140, %v95
    %v142 = vpop.permute.xlu0 %141
    %v144 = vsel %vm139, %v142, %v135
    %145 = vset.pattern.permute.xlu0 2
    %146 = vperm.xlu0 %145, %v125
    %v147 = vpop.permute.xlu0 %146
    %vm148 = vcmp.eq.s32.totalorder %v22, %v147
    %149 = vset.pattern.permute.xlu0 2
    %150 = vperm.xlu0 %149, %v95
    %v151 = vpop.permute.xlu0 %150
    %v153 = vsel %vm148, %v151, %v144
    %vm154 = vcmask 23552
    %155 = vst.msk [vmem:[%s1] sm:$0xff] %vm154, %v153
    // Predicated region
    $region10: #{tpu_custom_call.1} parent=1 // pred_check
      _
    $region11: #{tpu_custom_call.1} parent=1 // pred_check_branch
      %157 = sbr.rel (0) target = $region13
    $region12: #{tpu_custom_call.1} parent=1 // pred_region
      _
    $region13: #{tpu_custom_call.1} parent=1 // pred_fallthru
      _
    // Predicated region
    $region14: #{tpu_custom_call.1} parent=1 // pred_check
      _
    $region15: #{tpu_custom_call.1} parent=1 // pred_check_branch
      %159 = sbr.rel (0) target = $region17
    $region16: #{tpu_custom_call.1} parent=1 // pred_region
      _
    $region17: #{tpu_custom_call.1} parent=1 // pred_fallthru
      _
    %160 = vsyncpa [#allocation3], 1

</llo_original>
